<compile_context>
chip_gen: v6e
topology: v6e:2x2x1
jax: 0.10.0
libtpu: 0.0.40
codegen_flags: <defaults>
</compile_context>

<pallas_src>
import math

import jax
import jax.numpy as jnp
from jax.experimental import pallas as pl
from jax.experimental.pallas import tpu as pltpu


def _round_up(x, m):
    return ((x + m - 1) // m) * m


def _lane_fold_factor(ss, max_fold):
    """Smallest F with (F * ss) % 128 == 0; 1 if already lane-dense or F too big."""
    if ss % 128 == 0:
        return 1
    f = 128 // math.gcd(ss, 128)
    return f if f <= max_fold else 1


def _pick_row_tile(M, row_align, tile_m, bytes_per_row, invariant_bytes,
                   vmem_budget=48 * 1024 * 1024):
    """Pick the per-step row tile (in original rows) and the padded M.

    Prefers (a) tiles that divide M exactly (no padded-output strip copy),
    (b) >= 2 grid steps when M allows it (v7x: 2 TensorCores with the
    "parallel" grid axis), (c) the largest tile fitting the VMEM budget.
    """
    avail = max(vmem_budget - 2 * invariant_bytes, 4 * 1024 * 1024)
    max_rows = max(row_align, (avail // max(bytes_per_row, 1)) // row_align * row_align)
    tile_m = max(row_align, min(_round_up(tile_m, row_align), max_rows))

    if M % row_align == 0:
        n_units = M // row_align
        max_k = min(tile_m // row_align, n_units)
        if n_units >= 2:                      # keep >= 2 grid steps for megacore
            max_k = min(max_k, n_units // 2)
        max_k = max(max_k, 1)
        k = max_k
        while n_units % k:
            k -= 1
        if 4 * k >= max_k:                    # divisor tile is big enough
            return row_align * k, M
    # Fall back to padding (the trailing [:M] slice then costs one extra HBM
    # pass over the padded output -- unavoidable for awkward B*T).
    tM = min(_round_up(tile_m, row_align), _round_up(M, row_align))
    if M > row_align:
        tM = min(tM, _round_up(_round_up(M, row_align) // 2, row_align))
    tM = max(tM, row_align)
    return tM, _round_up(M, tM)


def _crf_kernel_expanded(feats_ref, w_ref, b_ref, trans_ref, mask_ref, out_ref):
    # feats_ref: (tMf, F*H)   w_ref: (F*H, F*SS)   b_ref: (1, F*SS)
    # trans_ref: (F, F*SS)    mask_ref: (tMf, F)   out_ref: (tMf, F*SS)
    em = jnp.dot(feats_ref[...], w_ref[...], preferred_element_type=jnp.float32)
    if trans_ref.shape[0] == 1:
        # F == 1: two-sided broadcast (tM,1)*(1,SS) on the VPU; nothing is
        # materialized at (tM, SS) before the fused add.
        tr = mask_ref[...] * trans_ref[...]
    else:
        # F > 1: contract the per-row t>0 mask against the block-diagonal
        # transition; lands the transition term directly in the folded
        # lane-dense layout (tiny K=F matmul, MXU has plenty of slack here).
        tr = jnp.dot(mask_ref[...], trans_ref[...], preferred_element_type=jnp.float32)
    out_ref[...] = (em + b_ref[...] + tr).astype(out_ref.dtype)


def _crf_kernel_two_stage(feats_ref, wt_ref, expand_ref, b_ref, trans_ref,
                          mask_ref, out_ref):
    # feats_ref: (tM, H)   wt_ref: (H, S)   expand_ref: (S, S*S)
    # b_ref: (1, S*S)      trans_ref: (1, S*S)   mask_ref: (tM, 1)
    em_s = jnp.dot(feats_ref[...], wt_ref[...], preferred_element_type=jnp.float32)
    em = jnp.dot(em_s, expand_ref[...], preferred_element_type=jnp.float32)
    out_ref[...] = (em + b_ref[...] + trans_ref[...] * mask_ref[...]
                    ).astype(out_ref.dtype)


def crf_forward(feats, emission_w, emission_b, transition, *,
                tile_m=512, expand_max_ss=256, max_lane_fold=4,
                matmul_dtype=None, out_dtype=jnp.float32):
    """feats: (B, T, H) -> crf_scores: (B, T, S, S).

    matmul_dtype: optional MXU-operand cast (e.g. jnp.bfloat16 on v6e/v7x to
      halve feats/weight traffic); accumulation and output stay f32 unless
      out_dtype is changed.
    """
    B, T, H = feats.shape
    S = emission_w.shape[0]
    SS = S * S
    M = B * T

    feats2d = feats.reshape(M, H)
    if matmul_dtype is not None:
        feats2d = feats2d.astype(matmul_dtype)
    w_dtype = feats2d.dtype
    feat_bytes = feats2d.dtype.itemsize
    out_bytes = jnp.dtype(out_dtype).itemsize
    sublane = 16 if min(feat_bytes, out_bytes) <= 2 else 8   # bf16 packs 2 rows/sublane

    use_expanded = SS <= expand_max_ss                       # gate on ~MXU N width
    F = _lane_fold_factor(SS, max_lane_fold) if use_expanded else 1
    row_align = sublane * F

    # One-time parameter layout prep (wrapper-side, no data-path FLOPs).
    w_t = emission_w.T.astype(w_dtype)                                   # (H, S)
    b_exp = jnp.repeat(emission_b.astype(jnp.float32)[None, :], S, axis=1)  # (1, S*S)
    trans_flat = transition.astype(jnp.float32).reshape(1, SS)

    if use_expanded:
        w_exp = jnp.repeat(w_t, S, axis=1)             # w_exp[h, i*S+j] = W[i, h]
        if F > 1:
            eye_f = jnp.eye(F, dtype=jnp.float32)
            w_op = (eye_f[:, None, :, None] * w_exp.astype(jnp.float32)[None, :, None, :]
                    ).reshape(F * H, F * SS).astype(w_dtype)
            trans_op = (eye_f[:, :, None] * trans_flat[0][None, None, :]
                        ).reshape(F, F * SS)
            b_op = jnp.tile(b_exp, (1, F))
        else:
            w_op, trans_op, b_op = w_exp, trans_flat, b_exp
        invariant_bytes = (w_op.size * feat_bytes + (trans_op.size + b_op.size) * 4)
        bytes_per_row = 2 * (H * feat_bytes + SS * out_bytes + 4)   # double-buffered
    else:
        expand = jnp.repeat(jnp.eye(S, dtype=jnp.float32), S, axis=1)  # (S, S*S) 0/1
        invariant_bytes = (w_t.size * feat_bytes + expand.size * 4
                           + (trans_flat.size + b_exp.size) * 4)
        bytes_per_row = 2 * (H * feat_bytes + (S + SS) * out_bytes + 4)

    tM, M_pad = _pick_row_tile(M, row_align, tile_m, bytes_per_row, invariant_bytes)
    if M_pad != M:
        feats2d = jnp.pad(feats2d, ((0, M_pad - M), (0, 0)))

    # Per-row t>0 mask (transition only applies for timestep t > 0).
    # TODO(synk): when T is a power of two this could be computed in-kernel
    # from pl.program_id to drop one input stream.
    m_idx = jnp.arange(M_pad, dtype=jnp.int32)
    mask = (((m_idx % T) != 0) & (m_idx < M)).astype(jnp.float32)[:, None]

    grid = (M_pad // tM,)
    vmem_need = tM * bytes_per_row + 2 * invariant_bytes + (2 << 20)
    vmem_limit = int(min(max(vmem_need, 32 << 20), 56 << 20))   # <= v7x 64 MiB phys
    params = pltpu.CompilerParams(dimension_semantics=("parallel",),
                                  vmem_limit_bytes=vmem_limit)

    if use_expanded:
        tMf = tM // F
        out2d = pl.pallas_call(
            _crf_kernel_expanded,
            out_shape=jax.ShapeDtypeStruct((M_pad // F, F * SS), out_dtype),
            grid_spec=pltpu.PrefetchScalarGridSpec(
                num_scalar_prefetch=0,
                grid=grid,
                in_specs=[
                    pl.BlockSpec((tMf, F * H), lambda m: (m, 0)),    # folded feats
                    pl.BlockSpec((F * H, F * SS), lambda m: (0, 0)), # block-diag W
                    pl.BlockSpec((1, F * SS), lambda m: (0, 0)),     # expanded bias
                    pl.BlockSpec((F, F * SS), lambda m: (0, 0)),     # block-diag trans
                    pl.BlockSpec((tMf, F), lambda m: (m, 0)),        # folded t>0 mask
                ],
                out_specs=pl.BlockSpec((tMf, F * SS), lambda m: (m, 0)),
            ),
            compiler_params=params,
        )(feats2d.reshape(M_pad // F, F * H), w_op, b_op, trans_op,
          mask.reshape(M_pad // F, F))
        out2d = out2d.reshape(M_pad, SS)      # free: same contiguous layout
    else:
        out2d = pl.pallas_call(
            _crf_kernel_two_stage,
            out_shape=jax.ShapeDtypeStruct((M_pad, SS), out_dtype),
            grid_spec=pltpu.PrefetchScalarGridSpec(
                num_scalar_prefetch=0,
                grid=grid,
                in_specs=[
                    pl.BlockSpec((tM, H), lambda m: (m, 0)),         # feats rows
                    pl.BlockSpec((H, S), lambda m: (0, 0)),          # W^T (no S*S blowup)
                    pl.BlockSpec((S, SS), lambda m: (0, 0)),         # 0/1 expansion
                    pl.BlockSpec((1, SS), lambda m: (0, 0)),         # expanded bias
                    pl.BlockSpec((1, SS), lambda m: (0, 0)),         # flat transition
                    pl.BlockSpec((tM, 1), lambda m: (m, 0)),         # t>0 mask
                ],
                out_specs=pl.BlockSpec((tM, SS), lambda m: (m, 0)),
            ),
            compiler_params=params,
        )(feats2d, w_t, expand, b_exp, trans_flat, mask)

    return out2d[:M].reshape(B, T, S, S)


if __name__ == "__main__":
    key = jax.random.PRNGKey(0)

    def make_case(k, B, T, H, S):
        k_feats, k_w, k_b = jax.random.split(k, 3)
        feats = jax.random.normal(k_feats, (B, T, H), dtype=jnp.float32)
        bound = 1.0 / (H ** 0.5)
        W = jax.random.uniform(k_w, (S, H), minval=-bound, maxval=bound,
                               dtype=jnp.float32)
        b = jax.random.uniform(k_b, (S,), minval=-bound, maxval=bound,
                               dtype=jnp.float32)
        start_ind, end_ind = S - 2, S - 1
        trans = jnp.zeros((S, S), jnp.float32)
        trans = trans.at[start_ind, :].set(-10000.0)
        trans = trans.at[:, end_ind].set(-10000.0)
        return feats, W, b, trans

    def reference(feats, W, b, trans):
        B, T, H = feats.shape
        S = W.shape[0]
        em = feats @ W.T + b
        em4 = jnp.broadcast_to(em[..., None], (B, T, S, S))
        return jnp.concatenate([em4[:, :1], em4[:, 1:] + trans[None, None]], axis=1)

    cases = [
        ("S=8  expanded path, lane fold F=2", (2, 8, 32, 8)),
        ("S=16 expanded path, F=1, 2-step grid", (2, 8, 32, 16)),
        ("S=20 two-stage path (S*S > 256)", (2, 4, 32, 20)),
    ]
    keys = jax.random.split(key, len(cases))
    for (name, (B, T, H, S)), k in zip(cases, keys):
        feats, W, b, trans = make_case(k, B, T, H, S)
        out = jax.block_until_ready(crf_forward(feats, W, b, trans))
        ref = reference(feats, W, b, trans)
        assert out.shape == (B, T, S, S), (name, out.shape)
        assert jnp.allclose(out, ref, atol=1e-4, rtol=1e-4), name

    print("KERNEL_OK")
</pallas_src>

<mosaic_0001>
module attributes {stable_mosaic.version = 11 : i64} {
  func.func @_crf_kernel_expanded(%arg0: i32, %arg1: memref<8x64xf32, #tpu.memory_space<vmem>>, %arg2: memref<64x128xf32, #tpu.memory_space<vmem>>, %arg3: memref<1x128xf32, #tpu.memory_space<vmem>>, %arg4: memref<2x128xf32, #tpu.memory_space<vmem>>, %arg5: memref<8x2xf32, #tpu.memory_space<vmem>>, %arg6: memref<8x128xf32, #tpu.memory_space<vmem>>) attributes {dimension_semantics = [#tpu.dimension_semantics<parallel>], iteration_bounds = array<i64: 1>, scalar_prefetch = 0 : i64, scratch_operands = 0 : i64, tpu.core_type = #tpu.core_type<tc>, window_params = [{transform_indices = @transform_0, window_bounds = array<i64: 8, 64>}, {pipeline_mode = #tpu.pipeline_mode<synchronous>, transform_indices = @transform_1, window_bounds = array<i64: 64, 128>}, {pipeline_mode = #tpu.pipeline_mode<synchronous>, transform_indices = @transform_2, window_bounds = array<i64: 1, 128>}, {pipeline_mode = #tpu.pipeline_mode<synchronous>, transform_indices = @transform_3, window_bounds = array<i64: 2, 128>}, {transform_indices = @transform_4, window_bounds = array<i64: 8, 2>}, {transform_indices = @transform_5, window_bounds = array<i64: 8, 128>}]} {
    %c0 = arith.constant 0 : index
    %c0_0 = arith.constant 0 : index
    %0 = vector.load %arg1[%c0, %c0_0] : memref<8x64xf32, #tpu.memory_space<vmem>>, vector<8x64xf32>
    %c0_1 = arith.constant 0 : index
    %c0_2 = arith.constant 0 : index
    %1 = vector.load %arg2[%c0_1, %c0_2] : memref<64x128xf32, #tpu.memory_space<vmem>>, vector<64x128xf32>
    %cst = arith.constant dense<0.000000e+00> : vector<8x128xf32>
    %2 = tpu.matmul %0, %1, %cst {dimension_numbers = #tpu.dot_dimension_numbers<[1], [0], [0], [1], [0, 0, 1, 1], [], []>} : vector<8x64xf32>, vector<64x128xf32>, vector<8x128xf32> -> vector<8x128xf32>
    %c0_3 = arith.constant 0 : index
    %c0_4 = arith.constant 0 : index
    %3 = vector.load %arg5[%c0_3, %c0_4] : memref<8x2xf32, #tpu.memory_space<vmem>>, vector<8x2xf32>
    %c0_5 = arith.constant 0 : index
    %c0_6 = arith.constant 0 : index
    %4 = vector.load %arg4[%c0_5, %c0_6] : memref<2x128xf32, #tpu.memory_space<vmem>>, vector<2x128xf32>
    %cst_7 = arith.constant dense<0.000000e+00> : vector<8x128xf32>
    %5 = tpu.matmul %3, %4, %cst_7 {dimension_numbers = #tpu.dot_dimension_numbers<[1], [0], [0], [1], [0, 0, 1, 1], [], []>} : vector<8x2xf32>, vector<2x128xf32>, vector<8x128xf32> -> vector<8x128xf32>
    %c0_8 = arith.constant 0 : index
    %c0_9 = arith.constant 0 : index
    %6 = vector.load %arg3[%c0_8, %c0_9] : memref<1x128xf32, #tpu.memory_space<vmem>>, vector<1x128xf32>
    %7 = vector.broadcast %6 : vector<1x128xf32> to vector<8x128xf32>
    %8 = arith.addf %2, %7 : vector<8x128xf32>
    %9 = arith.addf %8, %5 : vector<8x128xf32>
    %c0_10 = arith.constant 0 : index
    %c0_11 = arith.constant 0 : index
    %10 = vector.load %arg6[%c0_10, %c0_11] : memref<8x128xf32, #tpu.memory_space<vmem>>, vector<8x128xf32>
    tpu.vector_store %arg6[%c0_10, %c0_11], %9 {strides = array<i32>} : memref<8x128xf32, #tpu.memory_space<vmem>>, vector<8x128xf32>,
    return
  }
  func.func @transform_0(%arg0: i32) -> (i32, i32) {
    %c0_i32 = arith.constant 0 : i32
    %c0_i32_0 = arith.constant 0 : i32
    return %arg0, %c0_i32 : i32, i32
  }
  func.func @transform_1(%arg0: i32) -> (i32, i32) {
    %c0_i32 = arith.constant 0 : i32
    %c0_i32_0 = arith.constant 0 : i32
    %c0_i32_1 = arith.constant 0 : i32
    return %c0_i32, %c0_i32_0 : i32, i32
  }
  func.func @transform_2(%arg0: i32) -> (i32, i32) {
    %c0_i32 = arith.constant 0 : i32
    %c0_i32_0 = arith.constant 0 : i32
    %c0_i32_1 = arith.constant 0 : i32
    return %c0_i32, %c0_i32_0 : i32, i32
  }
  func.func @transform_3(%arg0: i32) -> (i32, i32) {
    %c0_i32 = arith.constant 0 : i32
    %c0_i32_0 = arith.constant 0 : i32
    %c0_i32_1 = arith.constant 0 : i32
    return %c0_i32, %c0_i32_0 : i32, i32
  }
  func.func @transform_4(%arg0: i32) -> (i32, i32) {
    %c0_i32 = arith.constant 0 : i32
    %c0_i32_0 = arith.constant 0 : i32
    return %arg0, %c0_i32 : i32, i32
  }
  func.func @transform_5(%arg0: i32) -> (i32, i32) {
    %c0_i32 = arith.constant 0 : i32
    %c0_i32_0 = arith.constant 0 : i32
    return %arg0, %c0_i32 : i32, i32
  }
}

</mosaic_0001>

<llo_original>
// kernel: tpu_custom_call.1
$region0: #{tpu_custom_call.1}
  #allocation0 [shape = 'u32[]', space=smem, size = 0x4, offset = 0x4, fixed_abs, tag = 'smem constant byte address 0x4 - core index']
  #allocation1 [shape = 'u32[144,128]{1,0:T(1,128)}', space=vmem, size = 0x12000, scoped, tag = 'internal scratch']
  %s0 = inlined_call_operand.vmem [shape: f32[8,64], index: 0, kind: input, shape index: {}]
  %s1 = inlined_call_operand.hbm [shape: f32[64,128], index: 1, kind: input, shape index: {}]
  %s2 = inlined_call_operand.vmem [shape: f32[1,128], index: 2, kind: input, shape index: {}]
  %s3 = inlined_call_operand.vmem [shape: f32[2,128], index: 3, kind: input, shape index: {}]
  %s4 = inlined_call_operand.vmem [shape: f32[8,2], index: 4, kind: input, shape index: {}]
  %s5 = inlined_call_operand.hbm [shape: f32[8,128], index: 5, kind: output, shape index: {}]
  %s6 = sld [smem:[#allocation0]]
  $region34: #{tpu_custom_call.1} parent=0
    _
  %s8 = ssub.s32 1, %s6
  %s9 = scalar_select 0, %s8, %s6
  $region1: #{tpu_custom_call.1} parent=0
    #allocation2 [shape = 'u8[32768]{0}', space=vmem, size = 0x8000, scoped, tag = 'input window, operand 1, single buffered']
    #allocation3 [shape = 's32[1]{0}', space=sflag, size = 0x4, scoped, tag = 'scoped memory for tpu_custom_call.1']
    #allocation4 [shape = 's32[1]{0}', space=sflag, size = 0x4, scoped, tag = 'scoped memory for tpu_custom_call.1']
    #allocation5 [shape = 'u8[4096]{0}', space=vmem, size = 0x1000, scoped, tag = 'output window, operand 0, single buffered']
    %10 = vsyncpa [#allocation3], 0
    %11 = vsyncpa [#allocation4], 0
    // Predicated region
    $region2: #{tpu_custom_call.1} parent=1 // pred_check
      _
    $region3: #{tpu_custom_call.1} parent=1 // pred_check_branch
      %13 = sbr.rel (0) target = $region5
    $region4: #{tpu_custom_call.1} parent=1 // pred_region
      _
    $region5: #{tpu_custom_call.1} parent=1 // pred_fallthru
      _
    // Predicated region
    $region6: #{tpu_custom_call.1} parent=1 // pred_check
      _
    $region7: #{tpu_custom_call.1} parent=1 // pred_check_branch
      %15 = sbr.rel (0) target = $region9
    $region8: #{tpu_custom_call.1} parent=1 // pred_region
      %s17 = ssub.s32 1024, 1024
      %18 = vsyncadd [#allocation3], %s17
      %s19 = sshll.u32 [#allocation2], 4
      %s20 = int_to_ptr.vmem [resolvable:$true] %s19
      %25 = dma.hbm_to_vmem [thread:$0]  %s1, 1024, %s20, [#allocation3], 128, 128, 8
    $region9: #{tpu_custom_call.1} parent=1 // pred_fallthru
      _
    // Predicated region
    $region10: #{tpu_custom_call.1} parent=1 // pred_check
      _
    $region11: #{tpu_custom_call.1} parent=1 // pred_check_branch
      %27 = sbr.rel (0) target = $region13
    $region12: #{tpu_custom_call.1} parent=1 // pred_region
      _
    $region13: #{tpu_custom_call.1} parent=1 // pred_fallthru
      _
    // Predicated region
    $region14: #{tpu_custom_call.1} parent=1 // pred_check
      _
    $region15: #{tpu_custom_call.1} parent=1 // pred_check_branch
      %29 = sbr.rel (0) target = $region17
    $region16: #{tpu_custom_call.1} parent=1 // pred_region
      _
    $region17: #{tpu_custom_call.1} parent=1 // pred_fallthru
      _
    // Predicated region
    $region18: #{tpu_custom_call.1} parent=1 // pred_check
      _
    $region19: #{tpu_custom_call.1} parent=1 // pred_check_branch
      %31 = sbr.rel (0) target = $region21
    $region20: #{tpu_custom_call.1} parent=1 // pred_region
      _
    $region21: #{tpu_custom_call.1} parent=1 // pred_fallthru
      _
    // Predicated region
    $region22: #{tpu_custom_call.1} parent=1 // pred_check
      _
    $region23: #{tpu_custom_call.1} parent=1 // pred_check_branch
      %33 = sbr.rel (0) target = $region25
    $region24: #{tpu_custom_call.1} parent=1 // pred_region
      %34 = dma.done [#allocation3], 1024
    $region25: #{tpu_custom_call.1} parent=1 // pred_fallthru
      _
    %v35 = vld [vmem:[%s0] sm:$0xff]
    %v36 = vld [vmem:[#allocation2] sm:$0xff]
    %v37 = vld [vmem:[#allocation2 + $0x8] sm:$0xff]
    %v38 = vld [vmem:[#allocation2 + $0x10] sm:$0xff]
    %v39 = vld [vmem:[#allocation2 + $0x18] sm:$0xff]
    %v40 = vld [vmem:[#allocation2 + $0x20] sm:$0xff]
    %v41 = vld [vmem:[#allocation2 + $0x28] sm:$0xff]
    %v42 = vld [vmem:[#allocation2 + $0x30] sm:$0xff]
    %v43 = vld [vmem:[#allocation2 + $0x38] sm:$0xff]
    %v44 = vld [vmem:[%s4] sm:$0xff]
    %v45 = vld [vmem:[%s3] sm:$0x3]
    %vm46 = vcmask 15360
    %v48 = vsel %vm46, %v44, 0
    %vm50 = vcmask 1041408
    %v52 = vsel %vm50, %v45, 0
    %54 = vmatprep.subr.mxu0 0.0
    %55 = vmatpush1.msra.mxu0 0.0
    %56 = vmatprep.subr.mxu0 0.0
    %57 = vmatpush1.msra.mxu0 0.0
    %58 = vmatprep.subr.mxu0 0.0
    %59 = vmatpush1.msra.mxu0 0.0
    %60 = vmatprep.subr.mxu0 0.0
    %61 = vmatpush1.msra.mxu0 0.0
    %62 = vmatprep.subr.mxu0 0.0
    %63 = vmatpush1.msra.mxu0 0.0
    %64 = vmatprep.subr.mxu0 0.0
    %65 = vmatpush1.msra.mxu0 0.0
    %66 = vmatprep.subr.mxu0 0.0
    %67 = vmatpush1.msra.mxu0 0.0
    %68 = vmatprep.subr.mxu0 0.0
    %69 = vmatpush1.msra.mxu0 0.0
    %70 = vmatprep.subr.mxu0 0.0
    %71 = vmatpush1.msra.mxu0 0.0
    %72 = vmatprep.subr.mxu0 0.0
    %73 = vmatpush1.msra.mxu0 0.0
    %74 = vmatprep.subr.mxu0 0.0
    %75 = vmatpush1.msra.mxu0 0.0
    %76 = vmatprep.subr.mxu0 0.0
    %77 = vmatpush1.msra.mxu0 0.0
    %78 = vmatprep.subr.mxu0 0.0
    %79 = vmatpush1.msra.mxu0 0.0
    %80 = vmatprep.subr.mxu0 0.0
    %81 = vmatpush1.msra.mxu0 0.0
    %82 = vmatprep.subr.mxu0 0.0
    %83 = vmatpush1.msra.mxu0 0.0
    %84 = vmatprep.subr.mxu0 0.0
    %85 = vmatpush1.msra.mxu0 %v52
    %86 = vmatprep.subr.mxu0 0.0
    %87 = vmatpush2.msra.mxu0 0.0
    %88 = vmatprep.subr.mxu0 0.0
    %89 = vmatpush2.msra.mxu0 0.0
    %90 = vmatprep.subr.mxu0 0.0
    %91 = vmatpush2.msra.mxu0 0.0
    %92 = vmatprep.subr.mxu0 0.0
    %93 = vmatpush2.msra.mxu0 0.0
    %94 = vmatprep.subr.mxu0 0.0
    %95 = vmatpush2.msra.mxu0 0.0
    %96 = vmatprep.subr.mxu0 0.0
    %97 = vmatpush2.msra.mxu0 0.0
    %98 = vmatprep.subr.mxu0 0.0
    %99 = vmatpush2.msra.mxu0 0.0
    %100 = vmatprep.subr.mxu0 0.0
    %101 = vmatpush2.msra.mxu0 0.0
    %102 = vmatprep.subr.mxu0 0.0
    %103 = vmatpush2.msra.mxu0 0.0
    %104 = vmatprep.subr.mxu0 0.0
    %105 = vmatpush2.msra.mxu0 0.0
    %106 = vmatprep.subr.mxu0 0.0
    %107 = vmatpush2.msra.mxu0 0.0
    %108 = vmatprep.subr.mxu0 0.0
    %109 = vmatpush2.msra.mxu0 0.0
    %110 = vmatprep.subr.mxu0 0.0
    %111 = vmatpush2.msra.mxu0 0.0
    %112 = vmatprep.subr.mxu0 0.0
    %113 = vmatpush2.msra.mxu0 0.0
    %114 = vmatprep.subr.mxu0 0.0
    %115 = vmatpush2.msra.mxu0 0.0
    %116 = vmatprep.subr.mxu0 0.0
    %117 = vmatpush2.msra.mxu0 0.0
    %118 = vmatprep.mubr.f32.mxu0 0.0
    %119 = vmatmul.mubr.f32.gmra.mxu0 %v48
    %v120 = vpop.f32.mrf.mxu0
    %v121 = vadd.f32 0.0, %v120
    %v122 = vpop.f32.mrf.mxu0
    %123 = vdwg.mxu0
    %v124 = vld [vmem:[%s2] sm:$0x1]
    %v126 = vlaneseq
    %v127 = vshrl.u32 %v126, 7
    %v128 = vsub.s32 0, %v127
    %v129 = vrot.slane %v124, %v128
    %vm131 = vcmask 523264
    %v133 = vsel %vm131, %v35, 0
    %135 = vmatprep.subr.mxu0 0.0
    %136 = vmatpush1.msra.mxu0 0.0
    %137 = vmatprep.subr.mxu0 0.0
    %138 = vmatpush1.msra.mxu0 0.0
    %139 = vmatprep.subr.mxu0 0.0
    %140 = vmatpush1.msra.mxu0 0.0
    %141 = vmatprep.subr.mxu0 0.0
    %142 = vmatpush1.msra.mxu0 0.0
    %143 = vmatprep.subr.mxu0 0.0
    %144 = vmatpush1.msra.mxu0 0.0
    %145 = vmatprep.subr.mxu0 0.0
    %146 = vmatpush1.msra.mxu0 0.0
    %147 = vmatprep.subr.mxu0 0.0
    %148 = vmatpush1.msra.mxu0 0.0
    %149 = vmatprep.subr.mxu0 0.0
    %150 = vmatpush1.msra.mxu0 0.0
    %151 = vmatprep.subr.mxu0 0.0
    %152 = vmatpush1.msra.mxu0 %v43
    %153 = vmatprep.subr.mxu0 0.0
    %154 = vmatpush1.msra.mxu0 %v42
    %155 = vmatprep.subr.mxu0 0.0
    %156 = vmatpush1.msra.mxu0 %v41
    %157 = vmatprep.subr.mxu0 0.0
    %158 = vmatpush1.msra.mxu0 %v40
    %159 = vmatprep.subr.mxu0 0.0
    %160 = vmatpush1.msra.mxu0 %v39
    %161 = vmatprep.subr.mxu0 0.0
    %162 = vmatpush1.msra.mxu0 %v38
    %163 = vmatprep.subr.mxu0 0.0
    %164 = vmatpush1.msra.mxu0 %v37
    %165 = vmatprep.subr.mxu0 0.0
    %166 = vmatpush1.msra.mxu0 %v36
    %167 = vmatprep.subr.mxu0 0.0
    %168 = vmatpush2.msra.mxu0 0.0
    %169 = vmatprep.subr.mxu0 0.0
    %170 = vmatpush2.msra.mxu0 0.0
    %171 = vmatprep.subr.mxu0 0.0
    %172 = vmatpush2.msra.mxu0 0.0
    %173 = vmatprep.subr.mxu0 0.0
    %174 = vmatpush2.msra.mxu0 0.0
    %175 = vmatprep.subr.mxu0 0.0
    %176 = vmatpush2.msra.mxu0 0.0
    %177 = vmatprep.subr.mxu0 0.0
    %178 = vmatpush2.msra.mxu0 0.0
    %179 = vmatprep.subr.mxu0 0.0
    %180 = vmatpush2.msra.mxu0 0.0
    %181 = vmatprep.subr.mxu0 0.0
    %182 = vmatpush2.msra.mxu0 0.0
    %183 = vmatprep.subr.mxu0 0.0
    %184 = vmatpush2.msra.mxu0 0.0
    %185 = vmatprep.subr.mxu0 0.0
    %186 = vmatpush2.msra.mxu0 0.0
    %187 = vmatprep.subr.mxu0 0.0
    %188 = vmatpush2.msra.mxu0 0.0
    %189 = vmatprep.subr.mxu0 0.0
    %190 = vmatpush2.msra.mxu0 0.0
    %191 = vmatprep.subr.mxu0 0.0
    %192 = vmatpush2.msra.mxu0 0.0
    %193 = vmatprep.subr.mxu0 0.0
    %194 = vmatpush2.msra.mxu0 0.0
    %195 = vmatprep.subr.mxu0 0.0
    %196 = vmatpush2.msra.mxu0 0.0
    %197 = vmatprep.subr.mxu0 0.0
    %198 = vmatpush2.msra.mxu0 0.0
    %199 = vmatprep.mubr.f32.mxu0 0.0
    %200 = vmatmul.mubr.f32.gmra.mxu0 %v133
    %v201 = vpop.f32.mrf.mxu0
    %v202 = vadd.f32 %v129, %v201
    %v203 = vpop.f32.mrf.mxu0
    %204 = vdwg.mxu0
    %v205 = vadd.f32 %v202, %v121
    %206 = vst [vmem:[#allocation5] sm:$0xff] %v205
    // Predicated region
    $region26: #{tpu_custom_call.1} parent=1 // pred_check
      _
    $region27: #{tpu_custom_call.1} parent=1 // pred_check_branch
      %208 = sbr.rel (0) target = $region29
    $region28: #{tpu_custom_call.1} parent=1 // pred_region
      %s210 = ssub.s32 128, 128
      %211 = vsyncadd [#allocation4], %s210
      %s213 = sshll.u32 [#allocation5], 4
      %s214 = int_to_ptr.vmem [resolvable:$true] %s213
      %216 = dma.vmem_to_hbm [thread:$0]  %s214, 128, %s5, [#allocation4]
    $region29: #{tpu_custom_call.1} parent=1 // pred_fallthru
      _
    // Predicated region
    $region30: #{tpu_custom_call.1} parent=1 // pred_check
      _
    $region31: #{tpu_custom_call.1} parent=1 // pred_check_branch
      %218 = sbr.rel (0) target = $region33
    $region32: #{tpu_custom_call.1} parent=1 // pred_region
      %219 = dma.done [#allocation4], 128
    $region33: #{tpu_custom_call.1} parent=1 // pred_fallthru
      _
    %220 = vsyncpa [#allocation3], 1
    %221 = vsyncpa [#allocation4], 1

</llo_original>
